<compile_context>
chip_gen: v7x
topology: tpu7x:2x2x1
jax: 0.10.0
libtpu: 0.0.40
codegen_flags: <defaults>
</compile_context>

<pallas_src>
import functools

import jax
import jax.numpy as jnp
from jax.experimental import pallas as pl
from jax.experimental.pallas import tpu as pltpu


def _focal_loss_kernel(x_ref, t_ref, w_ref, o_ref, *, gamma, n_rows, tile_n):
    # x_ref: (tile_n, C) logits (native dtype)
    # t_ref: (tile_n, 1) int32 target class
    # w_ref: (tile_n, 1) f32 per-sample class weight (pre-gathered in wrapper)
    # o_ref: (tile_n, 1) f32 per-row focal loss (0 for rows past the true N)
    i = pl.program_id(0)

    x = x_ref[...].astype(jnp.float32)
    t = t_ref[...]
    w = w_ref[...]

    # numerically stable log-sum-exp over the class (lane) dimension
    m = jnp.max(x, axis=-1, keepdims=True)                                  # (tn, 1)
    lse = jnp.log(jnp.sum(jnp.exp(x - m), axis=-1, keepdims=True)) + m      # (tn, 1)

    # gather logit at the target class via compare+select (no dynamic gather on TPU)
    classes = jax.lax.broadcasted_iota(jnp.int32, x.shape, 1)               # (tn, C)
    x_t = jnp.sum(jnp.where(classes == t, x, 0.0), axis=-1, keepdims=True)  # (tn, 1)

    # F.cross_entropy(..., reduction='none', weight=w): ce_i = w[t_i] * (lse_i - x_i[t_i])
    ce = w * (lse - x_t)                                                    # (tn, 1)

    # focal reweighting: (1 - exp(-ce))**gamma * ce
    if gamma == 0.0:
        focal = ce
    else:
        one_minus_p = 1.0 - jnp.exp(-ce)
        if float(gamma).is_integer():
            # integer gamma -> repeated multiplies on the VALU (no pow / extra EUP work)
            fac = one_minus_p
            for _ in range(int(gamma) - 1):
                fac = fac * one_minus_p
            focal = fac * ce
        else:
            focal = one_minus_p ** gamma * ce

    # Mask rows past the true batch end: the partial last tile reads unspecified
    # logits that can produce NaN/Inf through the LSE; the select discards them
    # (select does not propagate NaN from the unselected branch).
    row_ids = i * tile_n + jax.lax.broadcasted_iota(jnp.int32, (tile_n, 1), 0)
    o_ref[...] = jnp.where(row_ids < n_rows, focal, 0.0)


def _derive_tile_n(n, c, itemsize, *, vmem_budget_bytes=20 << 20, max_tile=4096,
                   min_chunks=4):
    """Largest batch tile (multiple of 8 sublanes) that fits a realistic VMEM budget.

    Per-row VMEM estimate:
      * logits tile in native dtype, lane-padded to a multiple of 128,
        double-buffered by the BlockSpec pipeline: 2 * c_lanes * itemsize
      * ~3 f32 slabs of in-kernel (tile_n, C) temporaries
        (f32 upcast, exp(x-m), iota/select):       3 * c_lanes * 4
    Budget of ~20 MiB keeps the total under v7x's 32 MiB scoped VMEM (64 MiB
    physical) with headroom, and trivially fits v5e/v6e.
    """
    c_lanes = ((c + 127) // 128) * 128
    per_row_bytes = 2 * c_lanes * itemsize + 3 * c_lanes * 4
    rows = max(8, vmem_budget_bytes // per_row_bytes)
    tile = min(max_tile, rows)
    # Guarantee several grid steps (when N allows) so the two v7x TensorCores
    # both get work and the pipeline has steps to overlap DMA with compute.
    tile = min(tile, max(8, -(-n // min_chunks)))
    tile = max(8, (tile // 8) * 8)
    return tile


def focal_loss(logits, targets, weight=None, gamma=0.0, *, tile_n=None):
    """logits: (N, C) float; targets: (N,) int; weight: (C,) float or None."""
    N, C = logits.shape
    targets = targets.astype(jnp.int32)

    # Pre-gather per-sample class weights in the wrapper (cheap XLA gather over N).
    if weight is None:
        w_per_sample = jnp.ones((N,), jnp.float32)
    else:
        w_per_sample = jnp.take(weight.astype(jnp.float32), targets)

    itemsize = jnp.dtype(logits.dtype).itemsize
    if tile_n is None:
        tile_n = _derive_tile_n(N, C, itemsize)

    n_chunks = pl.cdiv(N, tile_n)
    t2d = targets.reshape(N, 1)
    w2d = w_per_sample.reshape(N, 1)

    kernel = functools.partial(
        _focal_loss_kernel, gamma=float(gamma), n_rows=N, tile_n=tile_n)

    per_row = pl.pallas_call(
        kernel,
        out_shape=jax.ShapeDtypeStruct((N, 1), jnp.float32),
        grid_spec=pltpu.PrefetchScalarGridSpec(
            num_scalar_prefetch=0,
            grid=(n_chunks,),
            in_specs=[
                pl.BlockSpec((tile_n, C), lambda i: (i, 0)),   # logits tile
                pl.BlockSpec((tile_n, 1), lambda i: (i, 0)),   # targets tile
                pl.BlockSpec((tile_n, 1), lambda i: (i, 0)),   # per-sample weights tile
            ],
            out_specs=pl.BlockSpec((tile_n, 1), lambda i: (i, 0)),  # per-row losses
        ),
        compiler_params=pltpu.CompilerParams(
            dimension_semantics=("parallel",),   # independent tiles -> megacore sharding
            vmem_limit_bytes=32 * 1024 * 1024,
        ),
    )(logits, t2d, w2d)

    # Invalid rows (partial last tile) are written as 0 and anyway fall outside
    # the (N, 1) output; sum / true-N == mean over the real batch.
    return jnp.sum(per_row) / jnp.float32(N)


def focal_loss_ref(logits, targets, weight, gamma):
    logp = jax.nn.log_softmax(logits.astype(jnp.float32), axis=-1)
    nll = -jnp.take_along_axis(logp, targets[:, None], axis=-1)[:, 0]
    ce = nll * weight[targets]
    p = jnp.exp(-ce)
    return jnp.mean((1.0 - p) ** gamma * ce)


if __name__ == "__main__":
    key = jax.random.PRNGKey(0)
    gamma = 2.0

    # case 1: N multiple of the tile, with class weights and gamma=2
    N, C = 16, 32
    k1, k2 = jax.random.split(key)
    logits = jax.random.normal(k1, (N, C), dtype=jnp.float32)
    targets = jax.random.randint(k2, (N,), 0, C, dtype=jnp.int32)
    weight = jnp.linspace(0.5, 1.5, C, dtype=jnp.float32)

    out = jax.block_until_ready(focal_loss(logits, targets, weight=weight, gamma=gamma))
    ref = focal_loss_ref(logits, targets, weight, gamma)
    assert jnp.allclose(out, ref, rtol=1e-5, atol=1e-5), (out, ref)

    # case 2: no weight / gamma=0 path (plain CE mean)
    out0 = jax.block_until_ready(focal_loss(logits, targets, weight=None, gamma=0.0))
    ref0 = focal_loss_ref(logits, targets, jnp.ones((C,), jnp.float32), 0.0)
    assert jnp.allclose(out0, ref0, rtol=1e-5, atol=1e-5), (out0, ref0)

    # case 3: N NOT a multiple of the tile -> exercises the partial-last-block mask
    N2 = 13
    k3, k4 = jax.random.split(k1)
    logits2 = jax.random.normal(k3, (N2, C), dtype=jnp.float32)
    targets2 = jax.random.randint(k4, (N2,), 0, C, dtype=jnp.int32)
    out2 = jax.block_until_ready(focal_loss(logits2, targets2, weight=weight, gamma=gamma))
    ref2 = focal_loss_ref(logits2, targets2, weight, gamma)
    assert jnp.allclose(out2, ref2, rtol=1e-5, atol=1e-5), (out2, ref2)

    print("KERNEL_OK")
</pallas_src>

<mosaic_0001>
module attributes {stable_mosaic.version = 11 : i64} {
  func.func @_focal_loss_kernel(%arg0: i32, %arg1: memref<8x32xf32, #tpu.memory_space<vmem>>, %arg2: memref<8x1xi32, #tpu.memory_space<vmem>>, %arg3: memref<8x1xf32, #tpu.memory_space<vmem>>, %arg4: memref<8x1xf32, #tpu.memory_space<vmem>>) attributes {dimension_semantics = [#tpu.dimension_semantics<parallel>], iteration_bounds = array<i64: 2>, scalar_prefetch = 0 : i64, scratch_operands = 0 : i64, tpu.core_type = #tpu.core_type<tc>, window_params = [{transform_indices = @transform_0, window_bounds = array<i64: 8, 32>}, {transform_indices = @transform_1, window_bounds = array<i64: 8, 1>}, {transform_indices = @transform_2, window_bounds = array<i64: 8, 1>}, {transform_indices = @transform_3, window_bounds = array<i64: 8, 1>}]} {
    %c0 = arith.constant 0 : index
    %c0_0 = arith.constant 0 : index
    %0 = vector.load %arg1[%c0, %c0_0] : memref<8x32xf32, #tpu.memory_space<vmem>>, vector<8x32xf32>
    %c0_1 = arith.constant 0 : index
    %c0_2 = arith.constant 0 : index
    %1 = vector.load %arg2[%c0_1, %c0_2] : memref<8x1xi32, #tpu.memory_space<vmem>>, vector<8x1xi32>
    %c0_3 = arith.constant 0 : index
    %c0_4 = arith.constant 0 : index
    %2 = vector.load %arg3[%c0_3, %c0_4] : memref<8x1xf32, #tpu.memory_space<vmem>>, vector<8x1xf32>
    %cst = arith.constant dense<0xFF800000> : vector<8xf32>
    %3 = vector.multi_reduction <maximumf>, %0, %cst [1] : vector<8x32xf32> to vector<8xf32>
    %4 = vector.shape_cast %3 : vector<8xf32> to vector<8x1xf32>
    %5 = vector.broadcast %4 : vector<8x1xf32> to vector<8x32xf32>
    %6 = arith.subf %0, %5 : vector<8x32xf32>
    %7 = math.exp %6 : vector<8x32xf32>
    %cst_5 = arith.constant dense<0.000000e+00> : vector<8xf32>
    %8 = vector.multi_reduction <add>, %7, %cst_5 [1] : vector<8x32xf32> to vector<8xf32>
    %9 = vector.shape_cast %8 : vector<8xf32> to vector<8x1xf32>
    %10 = math.log %9 : vector<8x1xf32>
    %11 = arith.addf %10, %4 : vector<8x1xf32>
    %12 = tpu.iota {dimensions = array<i32: 1>} : vector<8x32xi32>
    %13 = vector.broadcast %1 : vector<8x1xi32> to vector<8x32xi32>
    %14 = arith.cmpi eq, %12, %13 : vector<8x32xi32>
    %cst_6 = arith.constant 0.000000e+00 : f32
    %15 = vector.broadcast %cst_6 : f32 to vector<8x32xf32>
    %16 = arith.select %14, %0, %15 : vector<8x32xi1>, vector<8x32xf32>
    %cst_7 = arith.constant dense<0.000000e+00> : vector<8xf32>
    %17 = vector.multi_reduction <add>, %16, %cst_7 [1] : vector<8x32xf32> to vector<8xf32>
    %18 = vector.shape_cast %17 : vector<8xf32> to vector<8x1xf32>
    %19 = arith.subf %11, %18 : vector<8x1xf32>
    %20 = arith.mulf %2, %19 : vector<8x1xf32>
    %cst_8 = arith.constant 0.000000e+00 : f32
    %21 = vector.broadcast %cst_8 : f32 to vector<8x1xf32>
    %22 = arith.subf %21, %20 : vector<8x1xf32>
    %23 = math.exp %22 : vector<8x1xf32>
    %cst_9 = arith.constant 1.000000e+00 : f32
    %24 = vector.broadcast %cst_9 : f32 to vector<8x1xf32>
    %25 = arith.subf %24, %23 : vector<8x1xf32>
    %26 = arith.mulf %25, %25 : vector<8x1xf32>
    %27 = arith.mulf %26, %20 : vector<8x1xf32>
    %c8_i32 = arith.constant 8 : i32
    %28 = arith.muli %arg0, %c8_i32 : i32
    %29 = tpu.iota {dimensions = array<i32: 0>} : vector<8x1xi32>
    %30 = vector.broadcast %28 : i32 to vector<8x1xi32>
    %31 = arith.addi %30, %29 : vector<8x1xi32>
    %c16_i32 = arith.constant 16 : i32
    %32 = vector.broadcast %c16_i32 : i32 to vector<8x1xi32>
    %33 = arith.cmpi slt, %31, %32 : vector<8x1xi32>
    %cst_10 = arith.constant 0.000000e+00 : f32
    %34 = vector.broadcast %cst_10 : f32 to vector<8x1xf32>
    %35 = arith.select %33, %27, %34 : vector<8x1xi1>, vector<8x1xf32>
    %c0_11 = arith.constant 0 : index
    %c0_12 = arith.constant 0 : index
    %36 = vector.load %arg4[%c0_11, %c0_12] : memref<8x1xf32, #tpu.memory_space<vmem>>, vector<8x1xf32>
    tpu.vector_store %arg4[%c0_11, %c0_12], %35 {strides = array<i32>} : memref<8x1xf32, #tpu.memory_space<vmem>>, vector<8x1xf32>,
    return
  }
  func.func @transform_0(%arg0: i32) -> (i32, i32) {
    %c0_i32 = arith.constant 0 : i32
    %c0_i32_0 = arith.constant 0 : i32
    return %arg0, %c0_i32 : i32, i32
  }
  func.func @transform_1(%arg0: i32) -> (i32, i32) {
    %c0_i32 = arith.constant 0 : i32
    %c0_i32_0 = arith.constant 0 : i32
    return %arg0, %c0_i32 : i32, i32
  }
  func.func @transform_2(%arg0: i32) -> (i32, i32) {
    %c0_i32 = arith.constant 0 : i32
    %c0_i32_0 = arith.constant 0 : i32
    return %arg0, %c0_i32 : i32, i32
  }
  func.func @transform_3(%arg0: i32) -> (i32, i32) {
    %c0_i32 = arith.constant 0 : i32
    %c0_i32_0 = arith.constant 0 : i32
    return %arg0, %c0_i32 : i32, i32
  }
}

</mosaic_0001>

<llo_original>
// kernel: tpu_custom_call.1
$region0: #{tpu_custom_call.1}
  #allocation0 [shape = 'u32[]', space=smem, size = 0x4, offset = 0x4, fixed_abs, tag = 'smem constant byte address 0x4 - core index']
  #allocation1 [shape = 'u32[144,128]{1,0:T(1,128)}', space=vmem, size = 0x12000, scoped, tag = 'internal scratch']
  %s0 = inlined_call_operand.vmem [shape: f32[16,32], index: 0, kind: input, shape index: {}]
  %s1 = inlined_call_operand.vmem [shape: s32[16,1], index: 1, kind: input, shape index: {}]
  %s2 = inlined_call_operand.vmem [shape: f32[16,1], index: 2, kind: input, shape index: {}]
  %s3 = inlined_call_operand.vmem [shape: f32[16,1], index: 3, kind: output, shape index: {}]
  %s4 = sld [smem:[#allocation0]]
  $region45: #{tpu_custom_call.1} parent=0
    _
  %s6 = ssub.s32 1, %s4
  %s7 = scalar_select 0, %s6, %s4
  loop: start=0, step=1, limit=4
  $region2: #{tpu_custom_call.1} parent=0 // loop_pre_header
    _
  $region3: #{tpu_custom_call.1} parent=0 // loop_header
    %s9 = sphi 0, %s13
    %p10 = scmp.ge.s32.totalorder %s9, 4
    %s19 = sphi 0, %s21
    %s22 = sphi 0, %s19
    %s23 = sphi 0, %s22
    %s39 = sphi 0, %s23
    %s45 = sphi 0, %s47
    %s48 = sphi 0, %s45
    %s49 = sphi 0, %s48
    %s65 = sphi 0, %s49
    %s71 = sphi 0, %s73
    %s74 = sphi 0, %s71
    %s75 = sphi 0, %s74
    %s91 = sphi 0, %s75
    %s97 = sphi 0, %s99
    %s100 = sphi 0, %s97
    %s101 = sphi 0, %s100
    %s117 = sphi 0, %s101
  $region4: #{tpu_custom_call.1} parent=0 // loop_header_branch
    %12 = sbr.rel (%p10) target = $region8
  $region5: #{tpu_custom_call.1} parent=0 // loop_body
    %s14 = ssub.s32 %s9, 1
    %s15 = ssub.s32 %s9, 2
    %s16 = sadd.s32 %s9, 1
    %s17 = ssub.s32 %s9, %s16
    %p18 = scmp.eq.s32.totalorder %s17, 0
    %s20 = sadd.s32 %s19, 1
    %s21 = scalar_select %p18, %s19, %s20
    %p24 = pneg %p18
    %p25 = scmp.eq.s32.totalorder %s9, 1
    %p26 = por %p24, %p25
    %p27 = scmp.ne.s32.totalorder %s19, %s22
    %p28 = scmp.eq.s32.totalorder %s9, 0
    %p29 = por %p27, %p28
    %p30 = scmp.ne.s32.totalorder %s19, %s22
    %p31 = scmp.eq.s32.totalorder %s14, 1
    %p32 = por %p30, %p31
    %p33 = scmp.ne.s32.totalorder %s22, %s23
    %p34 = scmp.eq.s32.totalorder %s14, 0
    %p35 = por %p33, %p34
    %p36 = scmp.ne.s32.totalorder %s22, %s23
    %p37 = scmp.eq.s32.totalorder %s15, 1
    %p38 = por %p36, %p37
    %p40 = scmp.ne.s32.totalorder %s23, %s39
    %p41 = scmp.eq.s32.totalorder %s15, 0
    %p42 = por %p40, %p41
    %s43 = ssub.s32 %s9, %s16
    %p44 = scmp.eq.s32.totalorder %s43, 0
    %s46 = sadd.s32 %s45, 1
    %s47 = scalar_select %p44, %s45, %s46
    %p50 = pneg %p44
    %p51 = scmp.eq.s32.totalorder %s9, 1
    %p52 = por %p50, %p51
    %p53 = scmp.ne.s32.totalorder %s45, %s48
    %p54 = scmp.eq.s32.totalorder %s9, 0
    %p55 = por %p53, %p54
    %p56 = scmp.ne.s32.totalorder %s45, %s48
    %p57 = scmp.eq.s32.totalorder %s14, 1
    %p58 = por %p56, %p57
    %p59 = scmp.ne.s32.totalorder %s48, %s49
    %p60 = scmp.eq.s32.totalorder %s14, 0
    %p61 = por %p59, %p60
    %p62 = scmp.ne.s32.totalorder %s48, %s49
    %p63 = scmp.eq.s32.totalorder %s15, 1
    %p64 = por %p62, %p63
    %p66 = scmp.ne.s32.totalorder %s49, %s65
    %p67 = scmp.eq.s32.totalorder %s15, 0
    %p68 = por %p66, %p67
    %s69 = ssub.s32 %s9, %s16
    %p70 = scmp.eq.s32.totalorder %s69, 0
    %s72 = sadd.s32 %s71, 1
    %s73 = scalar_select %p70, %s71, %s72
    %p76 = pneg %p70
    %p77 = scmp.eq.s32.totalorder %s9, 1
    %p78 = por %p76, %p77
    %p79 = scmp.ne.s32.totalorder %s71, %s74
    %p80 = scmp.eq.s32.totalorder %s9, 0
    %p81 = por %p79, %p80
    %p82 = scmp.ne.s32.totalorder %s71, %s74
    %p83 = scmp.eq.s32.totalorder %s14, 1
    %p84 = por %p82, %p83
    %p85 = scmp.ne.s32.totalorder %s74, %s75
    %p86 = scmp.eq.s32.totalorder %s14, 0
    %p87 = por %p85, %p86
    %p88 = scmp.ne.s32.totalorder %s74, %s75
    %p89 = scmp.eq.s32.totalorder %s15, 1
    %p90 = por %p88, %p89
    %p92 = scmp.ne.s32.totalorder %s75, %s91
    %p93 = scmp.eq.s32.totalorder %s15, 0
    %p94 = por %p92, %p93
    %s95 = ssub.s32 %s9, %s16
    %p96 = scmp.eq.s32.totalorder %s95, 0
    %s98 = sadd.s32 %s97, 1
    %s99 = scalar_select %p96, %s97, %s98
    %p102 = pneg %p96
    %p103 = scmp.eq.s32.totalorder %s9, 1
    %p104 = por %p102, %p103
    %p105 = scmp.ne.s32.totalorder %s97, %s100
    %p106 = scmp.eq.s32.totalorder %s9, 0
    %p107 = por %p105, %p106
    %p108 = scmp.ne.s32.totalorder %s97, %s100
    %p109 = scmp.eq.s32.totalorder %s14, 1
    %p110 = por %p108, %p109
    %p111 = scmp.ne.s32.totalorder %s100, %s101
    %p112 = scmp.eq.s32.totalorder %s14, 0
    %p113 = por %p111, %p112
    %p114 = scmp.ne.s32.totalorder %s100, %s101
    %p115 = scmp.eq.s32.totalorder %s15, 1
    %p116 = por %p114, %p115
    %p118 = scmp.ne.s32.totalorder %s101, %s117
    %p119 = scmp.eq.s32.totalorder %s15, 0
    %p120 = por %p118, %p119
    %p121 = scmp.le.s32.totalorder 1, %s9
    %p122 = scmp.lt.s32.totalorder %s9, 3
    %p123 = pnand %p121, %p122
    %p124 = pneg %p123
    // Predicated region
    $region9: #{tpu_custom_call.1} parent=5 // pred_check
      _
    $region10: #{tpu_custom_call.1} parent=5 // pred_check_branch
      %126 = sbr.rel (%p123) target = $region12
    $region11: #{tpu_custom_call.1} parent=5 // pred_region
      %s127 = ssub.s32 %s9, 1
    $region12: #{tpu_custom_call.1} parent=5 // pred_fallthru
      _
    %p128 = scmp.lt.s32.totalorder %s9, 2
    // Predicated region
    $region13: #{tpu_custom_call.1} parent=5 // pred_check
      %p129 = pneg %p128
    $region14: #{tpu_custom_call.1} parent=5 // pred_check_branch
      %131 = sbr.rel (%p129) target = $region16
    $region15: #{tpu_custom_call.1} parent=5 // pred_region
      // Predicated region
      $region17: #{tpu_custom_call.1} parent=15 // pred_check
        %p132 = pneg %p29
      $region18: #{tpu_custom_call.1} parent=15 // pred_check_branch
        %134 = sbr.rel (%p132) target = $region20
      $region19: #{tpu_custom_call.1} parent=15 // pred_region
        %p135 = scmp.lt.s32.totalorder %s9, 1
        %s136 = scalar_select %p135, %s9, 1
        %s137 = smul.addr %s136, 8
        %s138 = scalar_lea.vmem %s0, %s137
      $region20: #{tpu_custom_call.1} parent=15 // pred_fallthru
        _
      // Predicated region
      $region21: #{tpu_custom_call.1} parent=15 // pred_check
        %p139 = pneg %p55
      $region22: #{tpu_custom_call.1} parent=15 // pred_check_branch
        %141 = sbr.rel (%p139) target = $region24
      $region23: #{tpu_custom_call.1} parent=15 // pred_region
        %p142 = scmp.lt.s32.totalorder %s9, 1
        %s143 = scalar_select %p142, %s9, 1
        %s144 = smul.addr %s143, 8
        %s145 = scalar_lea.vmem %s1, %s144
      $region24: #{tpu_custom_call.1} parent=15 // pred_fallthru
        _
      // Predicated region
      $region25: #{tpu_custom_call.1} parent=15 // pred_check
        %p146 = pneg %p81
      $region26: #{tpu_custom_call.1} parent=15 // pred_check_branch
        %148 = sbr.rel (%p146) target = $region28
      $region27: #{tpu_custom_call.1} parent=15 // pred_region
        %p149 = scmp.lt.s32.totalorder %s9, 1
        %s150 = scalar_select %p149, %s9, 1
        %s151 = smul.addr %s150, 8
        %s152 = scalar_lea.vmem %s2, %s151
      $region28: #{tpu_custom_call.1} parent=15 // pred_fallthru
        _
    $region16: #{tpu_custom_call.1} parent=5 // pred_fallthru
      _
    %p153 = scmp.le.s32.totalorder 1, %s9
    %p154 = scmp.lt.s32.totalorder %s9, 3
    %p155 = pnand %p153, %p154
    %p156 = pneg %p155
    // Predicated region
    $region29: #{tpu_custom_call.1} parent=5 // pred_check
      _
    $region30: #{tpu_custom_call.1} parent=5 // pred_check_branch
      %158 = sbr.rel (%p155) target = $region32
    $region31: #{tpu_custom_call.1} parent=5 // pred_region
      %s159 = ssub.s32 %s9, 1
      %p160 = scmp.lt.s32.totalorder %s14, 1
      %s161 = scalar_select %p160, %s14, 1
      %s162 = smul.addr %s161, 8
      %s163 = scalar_lea.vmem %s0, %s162
      %p164 = pneg %p35
      %p165 = pneg %p32
      %p166 = scmp.lt.s32.totalorder %s14, 1
      %s167 = scalar_select %p166, %s14, 1
      %s168 = smul.addr %s167, 8
      %s169 = scalar_lea.vmem %s1, %s168
      %p170 = pneg %p61
      %p171 = pneg %p58
      %p172 = scmp.lt.s32.totalorder %s14, 1
      %s173 = scalar_select %p172, %s14, 1
      %s174 = smul.addr %s173, 8
      %s175 = scalar_lea.vmem %s2, %s174
      %p176 = pneg %p87
      %p177 = pneg %p84
      %p178 = pneg %p113
      %p179 = pneg %p110
      %p180 = scmp.lt.s32.totalorder %s14, 1
      %s181 = scalar_select %p180, %s14, 1
      %s182 = smul.addr %s181, 8
      %s183 = scalar_lea.vmem %s3, %s182
      %p184 = scmp.lt.s32.totalorder %s14, 1
      %s185 = scalar_select %p184, %s14, 1
      %s186 = smul.addr %s185, 8
      %s187 = scalar_lea.vmem %s0, %s186
      %p188 = scmp.lt.s32.totalorder %s14, 1
      %s189 = scalar_select %p188, %s14, 1
      %s190 = smul.addr %s189, 8
      %s191 = scalar_lea.vmem %s1, %s190
      %p192 = scmp.lt.s32.totalorder %s14, 1
      %s193 = scalar_select %p192, %s14, 1
      %s194 = smul.addr %s193, 8
      %s195 = scalar_lea.vmem %s2, %s194
      %p196 = scmp.lt.s32.totalorder %s14, 1
      %s197 = scalar_select %p196, %s14, 1
      %s198 = smul.addr %s197, 8
      %s199 = scalar_lea.vmem %s3, %s198
      %v200 = vld [vmem:[%s187] sm:$0xff]
      %v201 = vld [vmem:[%s191] sm:$0xff]
      %v202 = vld [vmem:[%s195] sm:$0xff]
      %vm203 = vcmask 261120
      %v204 = vsel %vm203, %v200, -inf
      %205 = vmax.xlane.f32.xlu0 %v204
      %v206 = vpop.xlane.xlu0 %205
      %v207 = vsub.f32 %v200, %v206
      %v208 = vmul.f32 %v207, 1.442695
      %v209 = vpow.pop %v208
      %v210 = vsel %vm203, %v209, 0.0
      %211 = vadd.xlane.f32.xlu0 %v210
      %v212 = vpop.xlane.xlu0 %211
      %v213 = vlog2.pop %v212
      %v214 = vmul.f32 %v213, 0.6931472
      %v215 = vadd.f32 %v214, %v206
      %v216 = vlaneseq
      %v217 = vand.u32 %v216, 127
      %218 = vset.pattern.permute.xlu0 0
      %219 = vperm.xlu0 %218, %v201
      %v220 = vpop.permute.xlu0 %219
      %vm221 = vcmp.eq.s32.totalorder %v217, %v220
      %v222 = vsel %vm221, %v200, 0.0
      %v223 = vsel %vm203, %v222, 0.0
      %224 = vadd.xlane.f32.xlu0 %v223
      %v225 = vpop.xlane.xlu0 %224
      %v226 = vsub.f32 %v215, %v225
      %v227 = vmul.f32 %v202, %v226
      %v228 = vsub.f32 0.0, %v227
      %v229 = vmul.f32 %v228, 1.442695
      %v230 = vpow.pop %v229
      %v231 = vsub.f32 1.0, %v230
      %v232 = vmul.f32 %v231, %v231
      %v233 = vmul.f32 %v232, %v227
      %s234 = smul.u32 %s14, 8
      %v235 = vlaneseq
      %v236 = vshrl.u32 %v235, 7
      %v237 = vstv %s234
      %v238 = vadd.s32 %v237, %v236
      %vm239 = vcmp.lt.s32.totalorder %v238, 16
      %v240 = vsel %vm239, %v233, 0.0
      %vm241 = vcmask 7168
      %242 = vst.msk [vmem:[%s199] sm:$0xff] %vm241, %v240
      %p243 = scmp.lt.s32.totalorder %s14, 1
      %s244 = scalar_select %p243, %s14, 1
      %s245 = smul.addr %s244, 8
      %s246 = scalar_lea.vmem %s3, %s245
      // Predicated region
      $region33: #{tpu_custom_call.1} parent=31 // pred_check
        %p247 = pneg %p110
      $region34: #{tpu_custom_call.1} parent=31 // pred_check_branch
        %249 = sbr.rel (%p247) target = $region36
      $region35: #{tpu_custom_call.1} parent=31 // pred_region
        _
      $region36: #{tpu_custom_call.1} parent=31 // pred_fallthru
        _
    $region32: #{tpu_custom_call.1} parent=5 // pred_fallthru
      _
    %p250 = scmp.le.s32.totalorder 2, %s9
    // Predicated region
    $region37: #{tpu_custom_call.1} parent=5 // pred_check
      %p251 = pneg %p250
    $region38: #{tpu_custom_call.1} parent=5 // pred_check_branch
      %253 = sbr.rel (%p251) target = $region40
    $region39: #{tpu_custom_call.1} parent=5 // pred_region
      %s254 = ssub.s32 %s9, 2
      // Predicated region
      $region41: #{tpu_custom_call.1} parent=39 // pred_check
        %p255 = pneg %p116
      $region42: #{tpu_custom_call.1} parent=39 // pred_check_branch
        %257 = sbr.rel (%p255) target = $region44
      $region43: #{tpu_custom_call.1} parent=39 // pred_region
        %p258 = scmp.lt.s32.totalorder %s15, 1
        %s259 = scalar_select %p258, %s15, 1
        %s260 = smul.addr %s259, 8
        %s261 = scalar_lea.vmem %s3, %s260
      $region44: #{tpu_custom_call.1} parent=39 // pred_fallthru
        _
    $region40: #{tpu_custom_call.1} parent=5 // pred_fallthru
      _
  $region6: #{tpu_custom_call.1} parent=0 // loop_footer
    %s13 = sadd.s32 1, %s9
  $region7: #{tpu_custom_call.1} parent=0 // loop_footer_branch
    %8 = sbr.rel target = $region3
  $region8: #{tpu_custom_call.1} parent=0 // loop_exit
    _

</llo_original>
